<compile_context>
chip_gen: v5e
topology: v5e:2x2
jax: 0.10.0
libtpu: 0.0.40
codegen_flags: <defaults>
</compile_context>

<pallas_src>
import jax
import jax.numpy as jnp
from jax.experimental import pallas as pl
from jax.experimental.pallas import tpu as pltpu


def linear_kernel(x_ref, w_ref, b_ref, o_ref):
    # x_ref: (TBr, 128, F) VMEM tile; w_ref: (1, 1, F) VMEM (resident);
    # b_ref: (1, 1) f32 SMEM; o_ref: (TBr, 128) VMEM (lane-dense rows of y).
    # Per-row dot product as VPU multiply + lane reduction; f32 accumulation.
    prod = x_ref[...].astype(jnp.float32) * w_ref[...].astype(jnp.float32)
    acc = jnp.sum(prod, axis=-1)                     # (TBr, 128) f32
    o_ref[...] = (acc + b_ref[0, 0]).astype(o_ref.dtype)


def _round_up(n, m):
    return ((n + m - 1) // m) * m


def _vmem_capacity_bytes():
    """Chip-derived VMEM capacity; conservative (v7x, 64 MiB) fallback."""
    try:
        info = pltpu.get_tpu_info()
        cap = int(getattr(info, "vmem_capacity_bytes", 0))
        if cap > 0:
            return cap
    except Exception:
        pass
    return 64 * 1024 * 1024


def _pick_batch_tile(n_feature, itemsize, vmem_cap):
    """Batch-tile rows, multiple of 1024, sized by the lane-padded tile bytes."""
    lane_padded_f = _round_up(n_feature, 128)        # VMEM pads the minor dim to 128 lanes
    bytes_per_row = lane_padded_f * itemsize
    x_budget = min(vmem_cap // 16, 8 * 1024 * 1024)  # per x buffer; Pallas double-buffers it
    tb = x_budget // bytes_per_row
    tb = max(1024, (tb // 1024) * 1024)              # -> out-block sublane count multiple of 8
    return min(tb, 32 * 1024)


def linear_net(x, w, b):
    """y = x @ w.T + b  (nn.Linear(n_feature, 1) forward).

    x: (B, F); w: (1, F) (PyTorch weight layout); b: scalar or (1,).
    Returns (B, 1) in x.dtype.
    """
    B, F = x.shape
    itemsize = jnp.dtype(x.dtype).itemsize
    cap = _vmem_capacity_bytes()
    TB = _pick_batch_tile(F, itemsize, cap)

    # Small batches -> single full-array tile; large batches -> multiple of TB.
    Bp = _round_up(B, 128)
    if Bp <= TB:
        TB = Bp
    else:
        Bp = _round_up(B, TB)
    if Bp != B:
        x = jnp.pad(x, ((0, Bp - B), (0, 0)))        # padded rows are sliced off below

    Gp, TBr = Bp // 128, TB // 128
    grid = (Gp // TBr,)

    # Lane-dense layouts: x -> (Gp, 128, F), output produced directly as (Gp, 128).
    # Both are row-major-contiguous views of the logical (Bp, F) / (Bp, 1) arrays.
    x3 = x.reshape(Gp, 128, F)
    w3 = jnp.asarray(w).reshape(1, 1, F)
    b2 = jnp.asarray(b, jnp.float32).reshape(1, 1)

    # VMEM accounting (lane/sublane padding included) + explicit limit with headroom.
    lane_padded_f = _round_up(F, 128)
    x_buf = TB * lane_padded_f * itemsize
    out_buf = max(TBr, 8) * 128 * itemsize
    w_buf = 8 * lane_padded_f * itemsize
    vmem_needed = 3 * x_buf + 2 * out_buf + w_buf    # 2x x bufs + product intermediate
    vmem_limit = max(int(vmem_needed * 1.5), 16 * 1024 * 1024)
    vmem_limit = min(vmem_limit, (cap * 3) // 4)

    out = pl.pallas_call(
        linear_kernel,
        out_shape=jax.ShapeDtypeStruct((Gp, 128), x.dtype),
        grid=grid,
        in_specs=[
            pl.BlockSpec((TBr, 128, F), lambda i: (i, 0, 0)),   # x tiles (auto double-buffered)
            pl.BlockSpec((1, 1, F), lambda i: (0, 0, 0)),       # weight, VMEM-resident
            pl.BlockSpec(memory_space=pltpu.SMEM),              # bias scalar
        ],
        out_specs=pl.BlockSpec((TBr, 128), lambda i: (i, 0)),   # lane-dense output slab
        compiler_params=pltpu.CompilerParams(
            dimension_semantics=("parallel",),
            vmem_limit_bytes=int(vmem_limit),
        ),
    )(x3, w3, b2)

    return out.reshape(Bp, 1)[:B]


if __name__ == "__main__":
    # Small shapes consistent with the module: batch=8, n_feature=32.
    batch, n_feature = 8, 32

    key = jax.random.PRNGKey(0)
    kx, kw, kb = jax.random.split(key, 3)

    x = jax.random.normal(kx, (batch, n_feature), dtype=jnp.float32)

    # Deterministic parameter init (PyTorch default: U(-1/sqrt(F), 1/sqrt(F))).
    bound = 1.0 / jnp.sqrt(jnp.float32(n_feature))
    w = jax.random.uniform(kw, (1, n_feature), jnp.float32, -bound, bound)  # (out=1, in=F)
    b = jax.random.uniform(kb, (1,), jnp.float32, -bound, bound)

    y = linear_net(x, w, b)
    y = jax.block_until_ready(y)

    # Reference check against plain JAX (same semantics as nn.Linear forward).
    y_ref = x @ w.T + b
    assert y.shape == (batch, 1)
    assert jnp.allclose(y, y_ref, atol=1e-5, rtol=1e-5)

    print("KERNEL_OK")
</pallas_src>

<mosaic_0001>
module attributes {stable_mosaic.version = 11 : i64} {
  func.func @linear_kernel(%arg0: i32, %arg1: memref<1x128x32xf32, #tpu.memory_space<vmem>>, %arg2: memref<1x1x32xf32, #tpu.memory_space<vmem>>, %arg3: memref<1x1xf32, #tpu.memory_space<smem>>, %arg4: memref<1x128xf32, #tpu.memory_space<vmem>>) attributes {dimension_semantics = [#tpu.dimension_semantics<parallel>], iteration_bounds = array<i64: 1>, scalar_prefetch = 0 : i64, scratch_operands = 0 : i64, tpu.core_type = #tpu.core_type<tc>, window_params = [{transform_indices = @transform_0, window_bounds = array<i64: 1, 128, 32>}, {pipeline_mode = #tpu.pipeline_mode<synchronous>, transform_indices = @transform_1, window_bounds = array<i64: 1, 1, 32>}, {transform_indices = @transform_2, window_bounds = array<i64: 1, 1>}, {transform_indices = @transform_3, window_bounds = array<i64: 1, 128>}]} {
    %c0 = arith.constant 0 : index
    %c0_0 = arith.constant 0 : index
    %c0_1 = arith.constant 0 : index
    %0 = vector.load %arg1[%c0, %c0_0, %c0_1] : memref<1x128x32xf32, #tpu.memory_space<vmem>>, vector<1x128x32xf32>
    %c0_2 = arith.constant 0 : index
    %c0_3 = arith.constant 0 : index
    %c0_4 = arith.constant 0 : index
    %1 = vector.load %arg2[%c0_2, %c0_3, %c0_4] : memref<1x1x32xf32, #tpu.memory_space<vmem>>, vector<1x1x32xf32>
    %2 = vector.broadcast %1 : vector<1x1x32xf32> to vector<1x128x32xf32>
    %3 = arith.mulf %0, %2 : vector<1x128x32xf32>
    %cst = arith.constant dense<0.000000e+00> : vector<1x128xf32>
    %4 = vector.multi_reduction <add>, %3, %cst [2] : vector<1x128x32xf32> to vector<1x128xf32>
    %c0_5 = arith.constant 0 : index
    %c0_6 = arith.constant 0 : index
    %5 = memref.load %arg3[%c0_5, %c0_6] : memref<1x1xf32, #tpu.memory_space<smem>>
    %6 = vector.broadcast %5 : f32 to vector<1x128xf32>
    %7 = arith.addf %4, %6 : vector<1x128xf32>
    %c0_7 = arith.constant 0 : index
    %c0_8 = arith.constant 0 : index
    %8 = vector.load %arg4[%c0_7, %c0_8] : memref<1x128xf32, #tpu.memory_space<vmem>>, vector<1x128xf32>
    tpu.vector_store %arg4[%c0_7, %c0_8], %7 {strides = array<i32>} : memref<1x128xf32, #tpu.memory_space<vmem>>, vector<1x128xf32>,
    return
  }
  func.func @transform_0(%arg0: i32) -> (i32, i32, i32) {
    %c0_i32 = arith.constant 0 : i32
    %c0_i32_0 = arith.constant 0 : i32
    %c0_i32_1 = arith.constant 0 : i32
    return %arg0, %c0_i32, %c0_i32_0 : i32, i32, i32
  }
  func.func @transform_1(%arg0: i32) -> (i32, i32, i32) {
    %c0_i32 = arith.constant 0 : i32
    %c0_i32_0 = arith.constant 0 : i32
    %c0_i32_1 = arith.constant 0 : i32
    %c0_i32_2 = arith.constant 0 : i32
    return %c0_i32, %c0_i32_0, %c0_i32_1 : i32, i32, i32
  }
  func.func @transform_2(%arg0: i32) -> (i32, i32) {
    %c0_i32 = arith.constant 0 : i32
    %c0_i32_0 = arith.constant 0 : i32
    %c0_i32_1 = arith.constant 0 : i32
    return %c0_i32, %c0_i32_0 : i32, i32
  }
  func.func @transform_3(%arg0: i32) -> (i32, i32) {
    %c0_i32 = arith.constant 0 : i32
    %c0_i32_0 = arith.constant 0 : i32
    return %arg0, %c0_i32 : i32, i32
  }
}

</mosaic_0001>

<llo_original>
// kernel: tpu_custom_call.1
$region0: #{tpu_custom_call.1}
  #allocation0 [shape = 'u32[]', space=smem, size = 0x4, offset = 0x4, fixed_abs, tag = 'smem constant byte address 0x4 - core index']
  #allocation1 [shape = 'u32[72,128]{1,0:T(1,128)}', space=vmem, size = 0x9000, scoped, tag = 'internal scratch']
  #allocation2 [shape = 'f32[1,1]{1,0:T(1,128)S(6)}', space=smem, size = 0x200, scoped, tag = 'scoped memory for tpu_custom_call.1']
  %s0 = inlined_call_operand.vmem [shape: f32[1,128,32], index: 0, kind: input, shape index: {}]
  %s1 = inlined_call_operand.vmem [shape: f32[1,1,32], index: 1, kind: input, shape index: {}]
  %s2 = inlined_call_operand.<no memory space> [shape: f32[1,1], index: 2, kind: input, shape index: {}]
  %s3 = inlined_call_operand.hbm [shape: f32[1,128], index: 3, kind: output, shape index: {}]
  %s4 = sld [smem:[#allocation0]]
  $region22: #{tpu_custom_call.1} parent=0
    _
  %s6 = ssub.s32 1, %s4
  %s7 = scalar_select 0, %s6, %s4
  %8 = sst [smem:[#allocation2]] %s2
  $region1: #{tpu_custom_call.1} parent=0
    #allocation3 [shape = 'u8[512]{0}', space=vmem, size = 0x400, scoped, tag = 'output window, operand 0, single buffered']
    #allocation4 [shape = 's32[1]{0}', space=sflag, size = 0x4, scoped, tag = 'scoped memory for tpu_custom_call.1']
    %9 = vsyncpa [#allocation4], 0
    // Predicated region
    $region2: #{tpu_custom_call.1} parent=1 // pred_check
      _
    $region3: #{tpu_custom_call.1} parent=1 // pred_check_branch
      %11 = sbr.rel (0) target = $region5
    $region4: #{tpu_custom_call.1} parent=1 // pred_region
      _
    $region5: #{tpu_custom_call.1} parent=1 // pred_fallthru
      _
    // Predicated region
    $region6: #{tpu_custom_call.1} parent=1 // pred_check
      _
    $region7: #{tpu_custom_call.1} parent=1 // pred_check_branch
      %13 = sbr.rel (0) target = $region9
    $region8: #{tpu_custom_call.1} parent=1 // pred_region
      _
    $region9: #{tpu_custom_call.1} parent=1 // pred_fallthru
      _
    // Predicated region
    $region10: #{tpu_custom_call.1} parent=1 // pred_check
      _
    $region11: #{tpu_custom_call.1} parent=1 // pred_check_branch
      %15 = sbr.rel (0) target = $region13
    $region12: #{tpu_custom_call.1} parent=1 // pred_region
      _
    $region13: #{tpu_custom_call.1} parent=1 // pred_fallthru
      _
    %v16 = vld [vmem:[%s0] sm:$0xff]
    %v17 = vld [vmem:[%s0 + $0x8] sm:$0xff]
    %v18 = vld [vmem:[%s0 + $0x10] sm:$0xff]
    %v19 = vld [vmem:[%s0 + $0x18] sm:$0xff]
    %v20 = vld [vmem:[%s0 + $0x20] sm:$0xff]
    %v21 = vld [vmem:[%s0 + $0x28] sm:$0xff]
    %v22 = vld [vmem:[%s0 + $0x30] sm:$0xff]
    %v23 = vld [vmem:[%s0 + $0x38] sm:$0xff]
    %v24 = vld [vmem:[%s0 + $0x40] sm:$0xff]
    %v25 = vld [vmem:[%s0 + $0x48] sm:$0xff]
    %v26 = vld [vmem:[%s0 + $0x50] sm:$0xff]
    %v27 = vld [vmem:[%s0 + $0x58] sm:$0xff]
    %v28 = vld [vmem:[%s0 + $0x60] sm:$0xff]
    %v29 = vld [vmem:[%s0 + $0x68] sm:$0xff]
    %v30 = vld [vmem:[%s0 + $0x70] sm:$0xff]
    %v31 = vld [vmem:[%s0 + $0x78] sm:$0xff]
    %v32 = vld [vmem:[%s1] sm:$0x1]
    %v34 = vperm.slane %v32, 0
    %v36 = vmul.f32 %v16, %v34
    %v37 = vmul.f32 %v17, %v34
    %v38 = vmul.f32 %v18, %v34
    %v39 = vmul.f32 %v19, %v34
    %v40 = vmul.f32 %v20, %v34
    %v41 = vmul.f32 %v21, %v34
    %v42 = vmul.f32 %v22, %v34
    %v43 = vmul.f32 %v23, %v34
    %v44 = vmul.f32 %v24, %v34
    %v45 = vmul.f32 %v25, %v34
    %v46 = vmul.f32 %v26, %v34
    %v47 = vmul.f32 %v27, %v34
    %v48 = vmul.f32 %v28, %v34
    %v49 = vmul.f32 %v29, %v34
    %v50 = vmul.f32 %v30, %v34
    %v51 = vmul.f32 %v31, %v34
    %vm52 = vcmask 261120
    %v53 = vsel %vm52, %v36, 0.0
    %54 = vadd.xlane.f32.xlu0 %v53
    %v55 = vpop.xlane.xlu0 %54
    %v56 = vsel %vm52, %v37, 0.0
    %57 = vadd.xlane.f32.xlu0 %v56
    %v58 = vpop.xlane.xlu0 %57
    %v59 = vsel %vm52, %v38, 0.0
    %60 = vadd.xlane.f32.xlu0 %v59
    %v61 = vpop.xlane.xlu0 %60
    %v62 = vsel %vm52, %v39, 0.0
    %63 = vadd.xlane.f32.xlu0 %v62
    %v64 = vpop.xlane.xlu0 %63
    %v65 = vsel %vm52, %v40, 0.0
    %66 = vadd.xlane.f32.xlu0 %v65
    %v67 = vpop.xlane.xlu0 %66
    %v68 = vsel %vm52, %v41, 0.0
    %69 = vadd.xlane.f32.xlu0 %v68
    %v70 = vpop.xlane.xlu0 %69
    %v71 = vsel %vm52, %v42, 0.0
    %72 = vadd.xlane.f32.xlu0 %v71
    %v73 = vpop.xlane.xlu0 %72
    %v74 = vsel %vm52, %v43, 0.0
    %75 = vadd.xlane.f32.xlu0 %v74
    %v76 = vpop.xlane.xlu0 %75
    %v77 = vsel %vm52, %v44, 0.0
    %78 = vadd.xlane.f32.xlu0 %v77
    %v79 = vpop.xlane.xlu0 %78
    %v80 = vsel %vm52, %v45, 0.0
    %81 = vadd.xlane.f32.xlu0 %v80
    %v82 = vpop.xlane.xlu0 %81
    %v83 = vsel %vm52, %v46, 0.0
    %84 = vadd.xlane.f32.xlu0 %v83
    %v85 = vpop.xlane.xlu0 %84
    %v86 = vsel %vm52, %v47, 0.0
    %87 = vadd.xlane.f32.xlu0 %v86
    %v88 = vpop.xlane.xlu0 %87
    %v89 = vsel %vm52, %v48, 0.0
    %90 = vadd.xlane.f32.xlu0 %v89
    %v91 = vpop.xlane.xlu0 %90
    %v92 = vsel %vm52, %v49, 0.0
    %93 = vadd.xlane.f32.xlu0 %v92
    %v94 = vpop.xlane.xlu0 %93
    %v95 = vsel %vm52, %v50, 0.0
    %96 = vadd.xlane.f32.xlu0 %v95
    %v97 = vpop.xlane.xlu0 %96
    %v98 = vsel %vm52, %v51, 0.0
    %99 = vadd.xlane.f32.xlu0 %v98
    %v100 = vpop.xlane.xlu0 %99
    %s101 = sld [smem:[#allocation2]]
    %v102 = vstv %s101
    %v103 = vadd.f32 %v55, %v102
    %v104 = vadd.f32 %v58, %v102
    %v105 = vadd.f32 %v61, %v102
    %v106 = vadd.f32 %v64, %v102
    %v107 = vadd.f32 %v67, %v102
    %v108 = vadd.f32 %v70, %v102
    %v109 = vadd.f32 %v73, %v102
    %v110 = vadd.f32 %v76, %v102
    %v111 = vadd.f32 %v79, %v102
    %v112 = vadd.f32 %v82, %v102
    %v113 = vadd.f32 %v85, %v102
    %v114 = vadd.f32 %v88, %v102
    %v115 = vadd.f32 %v91, %v102
    %v116 = vadd.f32 %v94, %v102
    %v117 = vadd.f32 %v97, %v102
    %v118 = vadd.f32 %v100, %v102
    %v135 = vlaneseq
    %v136 = vand.u32 %v135, 127
    %v137 = vperm.slane %v103, %v136
    %v138 = vadd.s32 %v136, 4294967288
    %v139 = vperm.slane %v104, %v138
    %vm140 = vcmask 130112
    %v141 = vsel %vm140, %v139, %v137
    %v142 = vadd.s32 %v136, 4294967280
    %v143 = vperm.slane %v105, %v142
    %vm144 = vcmask 195712
    %v145 = vsel %vm144, %v143, %v141
    %v146 = vadd.s32 %v136, 4294967272
    %v147 = vperm.slane %v106, %v146
    %vm148 = vcmask 261312
    %v149 = vsel %vm148, %v147, %v145
    %v150 = vadd.s32 %v136, 4294967264
    %v151 = vperm.slane %v107, %v150
    %vm152 = vcmask 326912
    %v153 = vsel %vm152, %v151, %v149
    %v154 = vadd.s32 %v136, 4294967256
    %v155 = vperm.slane %v108, %v154
    %vm156 = vcmask 392512
    %v157 = vsel %vm156, %v155, %v153
    %v158 = vadd.s32 %v136, 4294967248
    %v159 = vperm.slane %v109, %v158
    %vm160 = vcmask 458112
    %v161 = vsel %vm160, %v159, %v157
    %v162 = vadd.s32 %v136, 4294967240
    %v163 = vperm.slane %v110, %v162
    %vm164 = vcmask 523712
    %v165 = vsel %vm164, %v163, %v161
    %v166 = vadd.s32 %v136, 4294967232
    %v167 = vperm.slane %v111, %v166
    %vm168 = vcmask 589312
    %v169 = vsel %vm168, %v167, %v165
    %v170 = vadd.s32 %v136, 4294967224
    %v171 = vperm.slane %v112, %v170
    %vm172 = vcmask 654912
    %v173 = vsel %vm172, %v171, %v169
    %v174 = vadd.s32 %v136, 4294967216
    %v175 = vperm.slane %v113, %v174
    %vm176 = vcmask 720512
    %v177 = vsel %vm176, %v175, %v173
    %v178 = vadd.s32 %v136, 4294967208
    %v179 = vperm.slane %v114, %v178
    %vm180 = vcmask 786112
    %v181 = vsel %vm180, %v179, %v177
    %v182 = vadd.s32 %v136, 4294967200
    %v183 = vperm.slane %v115, %v182
    %vm184 = vcmask 851712
    %v185 = vsel %vm184, %v183, %v181
    %v186 = vadd.s32 %v136, 4294967192
    %v187 = vperm.slane %v116, %v186
    %vm188 = vcmask 917312
    %v189 = vsel %vm188, %v187, %v185
    %v190 = vadd.s32 %v136, 4294967184
    %v191 = vperm.slane %v117, %v190
    %vm192 = vcmask 982912
    %v193 = vsel %vm192, %v191, %v189
    %v194 = vadd.s32 %v136, 4294967176
    %v195 = vperm.slane %v118, %v194
    %vm196 = vcmask 1048512
    %v197 = vsel %vm196, %v195, %v193
    %199 = vst [vmem:[#allocation3] sm:$0x1] %v197
    // Predicated region
    $region14: #{tpu_custom_call.1} parent=1 // pred_check
      _
    $region15: #{tpu_custom_call.1} parent=1 // pred_check_branch
      %201 = sbr.rel (0) target = $region17
    $region16: #{tpu_custom_call.1} parent=1 // pred_region
      %203 = vsyncadd [#allocation4], 0
      %s205 = sshll.u32 [#allocation3], 4
      %s206 = int_to_ptr.vmem [resolvable:$true] %s205
      %s207 = sshll.u32 %s3, 4
      %s208 = int_to_ptr.hbm [resolvable:$true] %s207
      %210 = dma.vmem_to_hbm [thread:$0]  %s206, 16, %s208, [#allocation4]
    $region17: #{tpu_custom_call.1} parent=1 // pred_fallthru
      _
    // Predicated region
    $region18: #{tpu_custom_call.1} parent=1 // pred_check
      _
    $region19: #{tpu_custom_call.1} parent=1 // pred_check_branch
      %212 = sbr.rel (0) target = $region21
    $region20: #{tpu_custom_call.1} parent=1 // pred_region
      %214 = dma.done [#allocation4], 16
    $region21: #{tpu_custom_call.1} parent=1 // pred_fallthru
      _
    %215 = vsyncpa [#allocation4], 1

</llo_original>
